<compile_context>
chip_gen: v6e
topology: v6e:2x2x1
jax: 0.10.0
libtpu: 0.0.40
codegen_flags: <defaults>
</compile_context>

<pallas_src>
import functools

import jax
import jax.numpy as jnp
from jax.experimental import pallas as pl
from jax.experimental.pallas import tpu as pltpu


_TILE_VMEM_BUDGET = 40 * 1024 * 1024   # double-buffered x/out tile budget
_VMEM_LIMIT_BYTES = 48 * 1024 * 1024   # scoped cap: safe on v7x (64 MiB/TC)


def _round_up(v, m):
    return ((v + m - 1) // m) * m


# ---------------------------------------------------------------------------
# Kernel: in-kernel set mean (XLU) + 3x (MXU matmul, f32 acc) + bias + ReLU.
# ---------------------------------------------------------------------------
def conc_deepset_kernel(x_ref, w0_ref, b0_ref, w1_ref, b1_ref, w2_ref, b2_ref,
                        o_ref, *, inv_n):
    # Set mean over N: f32 sublane reduction (free slot vs the MXU).
    xm = jnp.sum(x_ref[...].astype(jnp.float32), axis=1) * inv_n    # (TB, D)

    # begin: Linear(D+1 -> H); count*w0[:,0] already folded into b0 on host.
    h = jnp.dot(xm.astype(w0_ref.dtype), w0_ref[...],
                preferred_element_type=jnp.float32)
    h = jnp.maximum(h + b0_ref[...], 0.0)                           # f32 bias/ReLU

    # hidden layer 1
    h = jnp.dot(h.astype(w1_ref.dtype), w1_ref[...],
                preferred_element_type=jnp.float32)
    h = jnp.maximum(h + b1_ref[...], 0.0)

    # hidden layer 2
    h = jnp.dot(h.astype(w2_ref.dtype), w2_ref[...],
                preferred_element_type=jnp.float32)
    h = jnp.maximum(h + b2_ref[...], 0.0)

    o_ref[...] = h.astype(o_ref.dtype)


# ---------------------------------------------------------------------------
# One-time weight prep: transpose to (in, out), pad out-features to 128 lanes,
# cast matmul operands.  Reusable across forwards of any batch size.
# ---------------------------------------------------------------------------
def prepare_params(params, *, compute_dtype=jnp.bfloat16):
    w0, b0 = params["w0"], params["b0"]        # (H, D+1), (H,)
    w1, b1 = params["w1"], params["b1"]        # (H, H),   (H,)
    w2, b2 = params["w2"], params["b2"]
    H = int(w0.shape[0])
    Hp = _round_up(H, 128)
    padH = Hp - H

    w0_rest = jnp.transpose(w0[:, 1:])                               # (D, H)
    return {
        "H": H, "Hp": Hp,
        "w0": jnp.pad(w0_rest, ((0, 0), (0, padH))).astype(compute_dtype),
        "w1": jnp.pad(jnp.transpose(w1), ((0, padH), (0, padH))).astype(compute_dtype),
        "w2": jnp.pad(jnp.transpose(w2), ((0, padH), (0, padH))).astype(compute_dtype),
        "w0_count": jnp.pad(w0[:, 0], (0, padH)).reshape(1, Hp).astype(jnp.float32),
        "b0": jnp.pad(b0, (0, padH)).reshape(1, Hp).astype(jnp.float32),
        "b1": jnp.pad(b1, (0, padH)).reshape(1, Hp).astype(jnp.float32),
        "b2": jnp.pad(b2, (0, padH)).reshape(1, Hp).astype(jnp.float32),
    }


# ---------------------------------------------------------------------------
# Forward wrapper.
# ---------------------------------------------------------------------------
def conc_deepset_forward(x, prepared, *, block_b=None, count=None,
                         return_padded=False):
    """x: (B, N, D).  prepared: output of prepare_params (or raw params)."""
    if "w0_count" not in prepared:                       # convenience fallback
        prepared = prepare_params(prepared)

    B, N, D = x.shape
    H, Hp = prepared["H"], prepared["Hp"]

    # Per-forward count fold (PyTorch: count == x.shape[0] after the mean == B).
    if count is None:
        count = float(B)
    b0_run = prepared["b0"] + jnp.float32(count) * prepared["w0_count"]   # (1, Hp)

    # --- batch tile selection ----------------------------------------------
    if block_b is None:
        per_row = 2 * N * D * x.dtype.itemsize + 2 * Hp * 4   # dbl-buf x + out
        fit = max(8, int(_TILE_VMEM_BUDGET // per_row))
        block_b = min(B, 1024, fit)
        if B > 512:
            # keep >= 2 grid steps so "parallel" can shard across v7x's 2 TCs
            block_b = min(block_b, _round_up(pl.cdiv(B, 2), 256))
    block_b = min(int(block_b), B)
    if block_b < B:
        # sublane-aligned; prefer 256-row multiples (v6e/v7x MXU pass width)
        block_b = (block_b // 256) * 256 if block_b >= 256 else (block_b // 8) * 8
        block_b = max(block_b, 8)

    grid = (pl.cdiv(B, block_b),)

    in_specs = [
        pl.BlockSpec((block_b, N, D), lambda i: (i, 0, 0)),   # x tiled over batch
        pl.BlockSpec(prepared["w0"].shape, lambda i: (0, 0)),  # weights/biases stay
        pl.BlockSpec(b0_run.shape, lambda i: (0, 0)),          # VMEM-resident
        pl.BlockSpec(prepared["w1"].shape, lambda i: (0, 0)),
        pl.BlockSpec(prepared["b1"].shape, lambda i: (0, 0)),
        pl.BlockSpec(prepared["w2"].shape, lambda i: (0, 0)),
        pl.BlockSpec(prepared["b2"].shape, lambda i: (0, 0)),
    ]
    out_spec = pl.BlockSpec((block_b, Hp), lambda i: (i, 0))

    kernel = functools.partial(conc_deepset_kernel, inv_n=1.0 / float(N))

    out_padded = pl.pallas_call(
        kernel,
        out_shape=jax.ShapeDtypeStruct((B, Hp), jnp.float32),
        grid=grid,
        in_specs=in_specs,
        out_specs=out_spec,
        compiler_params=pltpu.CompilerParams(
            dimension_semantics=("parallel",),      # megacore batch sharding
            vmem_limit_bytes=_VMEM_LIMIT_BYTES,
        ),
    )(x, prepared["w0"], b0_run, prepared["w1"], prepared["b1"],
      prepared["w2"], prepared["b2"])

    if return_padded:
        return out_padded
    return out_padded[:, :H]


# ---------------------------------------------------------------------------
# Init + pure-JAX reference (PyTorch-faithful) for verification.
# ---------------------------------------------------------------------------
def init_params(key, input_dim, output_dim):
    """nn.Linear-style uniform(-1/sqrt(fan_in), 1/sqrt(fan_in)) init."""
    ks = jax.random.split(key, 6)

    def lin(kw, kb, fan_in, fan_out):
        bound = 1.0 / jnp.sqrt(jnp.float32(fan_in))
        w = jax.random.uniform(kw, (fan_out, fan_in), jnp.float32, -bound, bound)
        b = jax.random.uniform(kb, (fan_out,), jnp.float32, -bound, bound)
        return w, b

    w0, b0 = lin(ks[0], ks[1], input_dim + 1, output_dim)   # begin: (H, D+1)
    w1, b1 = lin(ks[2], ks[3], output_dim, output_dim)
    w2, b2 = lin(ks[4], ks[5], output_dim, output_dim)
    return {"w0": w0, "b0": b0, "w1": w1, "b1": b1, "w2": w2, "b2": b2}


def reference_forward(x, p):
    mx = jnp.mean(x, axis=1)                                  # (B, D)
    B = mx.shape[0]
    cat = jnp.concatenate(
        [jnp.full((B, 1), float(B), dtype=mx.dtype), mx], axis=1)
    h = jnp.maximum(cat @ p["w0"].T + p["b0"], 0.0)
    h = jnp.maximum(h @ p["w1"].T + p["b1"], 0.0)
    h = jnp.maximum(h @ p["w2"].T + p["b2"], 0.0)
    return h


if __name__ == "__main__":
    B, N, D, H = 16, 4, 16, 32   # batch, set size, input_dim, output_dim

    key = jax.random.PRNGKey(0)
    kx, kp = jax.random.split(key)
    x = jax.random.normal(kx, (B, N, D), dtype=jnp.float32)
    params = init_params(kp, D, H)
    ref = reference_forward(x, params)

    # f32 matmul path, explicit 2-step batch grid.
    prep_f32 = prepare_params(params, compute_dtype=jnp.float32)
    out_f32 = jax.block_until_ready(
        conc_deepset_forward(x, prep_f32, block_b=8))
    assert out_f32.shape == (B, H)
    assert jnp.allclose(out_f32, ref, atol=1e-4, rtol=1e-4), "f32 mismatch"

    # default path: bf16 matmul operands, f32 mean/accumulate/bias/ReLU.
    prep_bf16 = prepare_params(params)   # compute_dtype=bf16
    out_bf16 = jax.block_until_ready(conc_deepset_forward(x, prep_bf16))
    assert out_bf16.shape == (B, H)
    assert jnp.allclose(out_bf16, ref, atol=2e-1, rtol=5e-2), "bf16 mismatch"

    # non-divisible batch (partial last tile): padded/OOB rows must not leak.
    B2 = 10
    x2 = x[:B2]
    ref2 = reference_forward(x2, params)
    out2 = jax.block_until_ready(
        conc_deepset_forward(x2, prep_f32, block_b=8))
    assert out2.shape == (B2, H)
    assert jnp.allclose(out2, ref2, atol=1e-4, rtol=1e-4), "partial-tile mismatch"
    assert bool(jnp.all(jnp.isfinite(out2))), "NaN/Inf leaked from padded rows"

    print("KERNEL_OK")
</pallas_src>

<mosaic_0001>
module attributes {stable_mosaic.version = 11 : i64} {
  func.func @conc_deepset_kernel(%arg0: i32, %arg1: memref<8x4x16xf32, #tpu.memory_space<vmem>>, %arg2: memref<16x128xf32, #tpu.memory_space<vmem>>, %arg3: memref<1x128xf32, #tpu.memory_space<vmem>>, %arg4: memref<128x128xf32, #tpu.memory_space<vmem>>, %arg5: memref<1x128xf32, #tpu.memory_space<vmem>>, %arg6: memref<128x128xf32, #tpu.memory_space<vmem>>, %arg7: memref<1x128xf32, #tpu.memory_space<vmem>>, %arg8: memref<8x128xf32, #tpu.memory_space<vmem>>) attributes {dimension_semantics = [#tpu.dimension_semantics<parallel>], iteration_bounds = array<i64: 2>, scalar_prefetch = 0 : i64, scratch_operands = 0 : i64, tpu.core_type = #tpu.core_type<tc>, window_params = [{transform_indices = @transform_0, window_bounds = array<i64: 8, 4, 16>}, {pipeline_mode = #tpu.pipeline_mode<synchronous>, transform_indices = @transform_1, window_bounds = array<i64: 16, 128>}, {pipeline_mode = #tpu.pipeline_mode<synchronous>, transform_indices = @transform_2, window_bounds = array<i64: 1, 128>}, {pipeline_mode = #tpu.pipeline_mode<synchronous>, transform_indices = @transform_3, window_bounds = array<i64: 128, 128>}, {pipeline_mode = #tpu.pipeline_mode<synchronous>, transform_indices = @transform_4, window_bounds = array<i64: 1, 128>}, {pipeline_mode = #tpu.pipeline_mode<synchronous>, transform_indices = @transform_5, window_bounds = array<i64: 128, 128>}, {pipeline_mode = #tpu.pipeline_mode<synchronous>, transform_indices = @transform_6, window_bounds = array<i64: 1, 128>}, {transform_indices = @transform_7, window_bounds = array<i64: 8, 128>}]} {
    %c0 = arith.constant 0 : index
    %c0_0 = arith.constant 0 : index
    %c0_1 = arith.constant 0 : index
    %0 = vector.load %arg1[%c0, %c0_0, %c0_1] : memref<8x4x16xf32, #tpu.memory_space<vmem>>, vector<8x4x16xf32>
    %cst = arith.constant dense<0.000000e+00> : vector<8x16xf32>
    %1 = vector.multi_reduction <add>, %0, %cst [1] : vector<8x4x16xf32> to vector<8x16xf32>
    %cst_2 = arith.constant 2.500000e-01 : f32
    %2 = vector.broadcast %cst_2 : f32 to vector<8x16xf32>
    %3 = arith.mulf %1, %2 : vector<8x16xf32>
    %c0_3 = arith.constant 0 : index
    %c0_4 = arith.constant 0 : index
    %4 = vector.load %arg2[%c0_3, %c0_4] : memref<16x128xf32, #tpu.memory_space<vmem>>, vector<16x128xf32>
    %cst_5 = arith.constant dense<0.000000e+00> : vector<8x128xf32>
    %5 = tpu.matmul %3, %4, %cst_5 {dimension_numbers = #tpu.dot_dimension_numbers<[1], [0], [0], [1], [0, 0, 1, 1], [], []>} : vector<8x16xf32>, vector<16x128xf32>, vector<8x128xf32> -> vector<8x128xf32>
    %c0_6 = arith.constant 0 : index
    %c0_7 = arith.constant 0 : index
    %6 = vector.load %arg3[%c0_6, %c0_7] : memref<1x128xf32, #tpu.memory_space<vmem>>, vector<1x128xf32>
    %7 = vector.broadcast %6 : vector<1x128xf32> to vector<8x128xf32>
    %8 = arith.addf %5, %7 : vector<8x128xf32>
    %cst_8 = arith.constant 0.000000e+00 : f32
    %9 = vector.broadcast %cst_8 : f32 to vector<8x128xf32>
    %10 = arith.maximumf %8, %9 : vector<8x128xf32>
    %c0_9 = arith.constant 0 : index
    %c0_10 = arith.constant 0 : index
    %11 = vector.load %arg4[%c0_9, %c0_10] : memref<128x128xf32, #tpu.memory_space<vmem>>, vector<128x128xf32>
    %cst_11 = arith.constant dense<0.000000e+00> : vector<8x128xf32>
    %12 = tpu.matmul %10, %11, %cst_11 {dimension_numbers = #tpu.dot_dimension_numbers<[1], [0], [0], [1], [0, 0, 1, 1], [], []>} : vector<8x128xf32>, vector<128x128xf32>, vector<8x128xf32> -> vector<8x128xf32>
    %c0_12 = arith.constant 0 : index
    %c0_13 = arith.constant 0 : index
    %13 = vector.load %arg5[%c0_12, %c0_13] : memref<1x128xf32, #tpu.memory_space<vmem>>, vector<1x128xf32>
    %14 = vector.broadcast %13 : vector<1x128xf32> to vector<8x128xf32>
    %15 = arith.addf %12, %14 : vector<8x128xf32>
    %cst_14 = arith.constant 0.000000e+00 : f32
    %16 = vector.broadcast %cst_14 : f32 to vector<8x128xf32>
    %17 = arith.maximumf %15, %16 : vector<8x128xf32>
    %c0_15 = arith.constant 0 : index
    %c0_16 = arith.constant 0 : index
    %18 = vector.load %arg6[%c0_15, %c0_16] : memref<128x128xf32, #tpu.memory_space<vmem>>, vector<128x128xf32>
    %cst_17 = arith.constant dense<0.000000e+00> : vector<8x128xf32>
    %19 = tpu.matmul %17, %18, %cst_17 {dimension_numbers = #tpu.dot_dimension_numbers<[1], [0], [0], [1], [0, 0, 1, 1], [], []>} : vector<8x128xf32>, vector<128x128xf32>, vector<8x128xf32> -> vector<8x128xf32>
    %c0_18 = arith.constant 0 : index
    %c0_19 = arith.constant 0 : index
    %20 = vector.load %arg7[%c0_18, %c0_19] : memref<1x128xf32, #tpu.memory_space<vmem>>, vector<1x128xf32>
    %21 = vector.broadcast %20 : vector<1x128xf32> to vector<8x128xf32>
    %22 = arith.addf %19, %21 : vector<8x128xf32>
    %cst_20 = arith.constant 0.000000e+00 : f32
    %23 = vector.broadcast %cst_20 : f32 to vector<8x128xf32>
    %24 = arith.maximumf %22, %23 : vector<8x128xf32>
    %c0_21 = arith.constant 0 : index
    %c0_22 = arith.constant 0 : index
    %25 = vector.load %arg8[%c0_21, %c0_22] : memref<8x128xf32, #tpu.memory_space<vmem>>, vector<8x128xf32>
    tpu.vector_store %arg8[%c0_21, %c0_22], %24 {strides = array<i32>} : memref<8x128xf32, #tpu.memory_space<vmem>>, vector<8x128xf32>,
    return
  }
  func.func @transform_0(%arg0: i32) -> (i32, i32, i32) {
    %c0_i32 = arith.constant 0 : i32
    %c0_i32_0 = arith.constant 0 : i32
    %c0_i32_1 = arith.constant 0 : i32
    return %arg0, %c0_i32, %c0_i32_0 : i32, i32, i32
  }
  func.func @transform_1(%arg0: i32) -> (i32, i32) {
    %c0_i32 = arith.constant 0 : i32
    %c0_i32_0 = arith.constant 0 : i32
    %c0_i32_1 = arith.constant 0 : i32
    return %c0_i32, %c0_i32_0 : i32, i32
  }
  func.func @transform_2(%arg0: i32) -> (i32, i32) {
    %c0_i32 = arith.constant 0 : i32
    %c0_i32_0 = arith.constant 0 : i32
    %c0_i32_1 = arith.constant 0 : i32
    return %c0_i32, %c0_i32_0 : i32, i32
  }
  func.func @transform_3(%arg0: i32) -> (i32, i32) {
    %c0_i32 = arith.constant 0 : i32
    %c0_i32_0 = arith.constant 0 : i32
    %c0_i32_1 = arith.constant 0 : i32
    return %c0_i32, %c0_i32_0 : i32, i32
  }
  func.func @transform_4(%arg0: i32) -> (i32, i32) {
    %c0_i32 = arith.constant 0 : i32
    %c0_i32_0 = arith.constant 0 : i32
    %c0_i32_1 = arith.constant 0 : i32
    return %c0_i32, %c0_i32_0 : i32, i32
  }
  func.func @transform_5(%arg0: i32) -> (i32, i32) {
    %c0_i32 = arith.constant 0 : i32
    %c0_i32_0 = arith.constant 0 : i32
    %c0_i32_1 = arith.constant 0 : i32
    return %c0_i32, %c0_i32_0 : i32, i32
  }
  func.func @transform_6(%arg0: i32) -> (i32, i32) {
    %c0_i32 = arith.constant 0 : i32
    %c0_i32_0 = arith.constant 0 : i32
    %c0_i32_1 = arith.constant 0 : i32
    return %c0_i32, %c0_i32_0 : i32, i32
  }
  func.func @transform_7(%arg0: i32) -> (i32, i32) {
    %c0_i32 = arith.constant 0 : i32
    %c0_i32_0 = arith.constant 0 : i32
    return %arg0, %c0_i32 : i32, i32
  }
}

</mosaic_0001>

<llo_original>
// kernel: tpu_custom_call.1
$region0: #{tpu_custom_call.1}
  #allocation0 [shape = 'u32[]', space=smem, size = 0x4, offset = 0x4, fixed_abs, tag = 'smem constant byte address 0x4 - core index']
  #allocation1 [shape = 'u32[144,128]{1,0:T(1,128)}', space=vmem, size = 0x12000, scoped, tag = 'internal scratch']
  %s0 = inlined_call_operand.hbm [shape: f32[16,4,16], index: 0, kind: input, shape index: {}]
  %s1 = inlined_call_operand.hbm [shape: f32[16,128], index: 1, kind: input, shape index: {}]
  %s2 = inlined_call_operand.vmem [shape: f32[1,128], index: 2, kind: input, shape index: {}]
  %s3 = inlined_call_operand.hbm [shape: f32[128,128], index: 3, kind: input, shape index: {}]
  %s4 = inlined_call_operand.vmem [shape: f32[1,128], index: 4, kind: input, shape index: {}]
  %s5 = inlined_call_operand.hbm [shape: f32[128,128], index: 5, kind: input, shape index: {}]
  %s6 = inlined_call_operand.vmem [shape: f32[1,128], index: 6, kind: input, shape index: {}]
  %s7 = inlined_call_operand.hbm [shape: f32[16,128], index: 7, kind: output, shape index: {}]
  %s8 = sld [smem:[#allocation0]]
  $region77: #{tpu_custom_call.1} parent=0
    _
  %s10 = ssub.s32 1, %s8
  %s11 = scalar_select 0, %s10, %s8
  $region1: #{tpu_custom_call.1} parent=0
    #allocation2 [shape = 'u8[32768]{0}', space=vmem, size = 0x8000, scoped, tag = 'input window, operand 0']
    #allocation3 [shape = 's32[2]{0}', space=sflag, size = 0x8, scoped, tag = 'scoped memory for tpu_custom_call.1']
    #allocation4 [shape = 's32[2]{0}', space=sflag, size = 0x8, scoped, tag = 'scoped memory for tpu_custom_call.1']
    #allocation5 [shape = 'u8[8192]{0}', space=vmem, size = 0x2000, scoped, tag = 'input window, operand 1, single buffered']
    #allocation6 [shape = 's32[1]{0}', space=sflag, size = 0x4, scoped, tag = 'scoped memory for tpu_custom_call.1']
    #allocation7 [shape = 'u8[65536]{0}', space=vmem, size = 0x10000, scoped, tag = 'input window, operand 3, single buffered']
    #allocation8 [shape = 'u8[65536]{0}', space=vmem, size = 0x10000, scoped, tag = 'input window, operand 5, single buffered']
    #allocation9 [shape = 's32[1]{0}', space=sflag, size = 0x4, scoped, tag = 'scoped memory for tpu_custom_call.1']
    #allocation10 [shape = 'u8[8192]{0}', space=vmem, size = 0x2000, scoped, tag = 'output window, operand 0']
    %12 = vsyncpa [#allocation3], 0
    %s13 = scalar_lea.sflag [#allocation3], 1
    %14 = vsyncpa %s13, 0
    %15 = vsyncpa [#allocation6], 0
    %16 = vsyncpa [#allocation9], 0
    %17 = vsyncpa [#allocation4], 0
    %s18 = scalar_lea.sflag [#allocation4], 1
    %19 = vsyncpa %s18, 0
    loop: start=0, step=1, limit=4
    $region2: #{tpu_custom_call.1} parent=1 // loop_pre_header
      _
    $region3: #{tpu_custom_call.1} parent=1 // loop_header
      %s21 = sphi 0, %s25
      %p22 = scmp.ge.s32.totalorder %s21, 4
      %s31 = sphi 0, %s33
      %s34 = sphi 0, %s31
      %s35 = sphi 0, %s34
      %s51 = sphi 0, %s35
      %s55 = sphi 0, %s55
      %s57 = sphi 0, %s55
      %s58 = sphi 0, %s57
      %s72 = sphi 0, %s58
      %s76 = sphi 0, %s76
      %s78 = sphi 0, %s76
      %s79 = sphi 0, %s78
      %s93 = sphi 0, %s79
      %s97 = sphi 0, %s97
      %s99 = sphi 0, %s97
      %s100 = sphi 0, %s99
      %s114 = sphi 0, %s100
      %s118 = sphi 0, %s118
      %s120 = sphi 0, %s118
      %s121 = sphi 0, %s120
      %s135 = sphi 0, %s121
      %s139 = sphi 0, %s139
      %s141 = sphi 0, %s139
      %s142 = sphi 0, %s141
      %s156 = sphi 0, %s142
      %s160 = sphi 0, %s160
      %s162 = sphi 0, %s160
      %s163 = sphi 0, %s162
      %s177 = sphi 0, %s163
      %s183 = sphi 0, %s185
      %s186 = sphi 0, %s183
      %s187 = sphi 0, %s186
      %s203 = sphi 0, %s187
    $region4: #{tpu_custom_call.1} parent=1 // loop_header_branch
      %24 = sbr.rel (%p22) target = $region8
    $region5: #{tpu_custom_call.1} parent=1 // loop_body
      %s26 = ssub.s32 %s21, 1
      %s27 = ssub.s32 %s21, 2
      %s28 = sadd.s32 %s21, 1
      %s29 = ssub.s32 %s21, %s28
      %p30 = scmp.eq.s32.totalorder %s29, 0
      %s32 = sadd.s32 %s31, 1
      %s33 = scalar_select %p30, %s31, %s32
      %p36 = pneg %p30
      %p37 = scmp.eq.s32.totalorder %s21, 1
      %p38 = por %p36, %p37
      %p39 = scmp.ne.s32.totalorder %s31, %s34
      %p40 = scmp.eq.s32.totalorder %s21, 0
      %p41 = por %p39, %p40
      %p42 = scmp.ne.s32.totalorder %s31, %s34
      %p43 = scmp.eq.s32.totalorder %s26, 1
      %p44 = por %p42, %p43
      %p45 = scmp.ne.s32.totalorder %s34, %s35
      %p46 = scmp.eq.s32.totalorder %s26, 0
      %p47 = por %p45, %p46
      %p48 = scmp.ne.s32.totalorder %s34, %s35
      %p49 = scmp.eq.s32.totalorder %s27, 1
      %p50 = por %p48, %p49
      %p52 = scmp.ne.s32.totalorder %s35, %s51
      %p53 = scmp.eq.s32.totalorder %s27, 0
      %p54 = por %p52, %p53
      %s56 = sadd.s32 %s55, 1
      %p59 = scmp.eq.s32.totalorder %s21, 1
      %p60 = scmp.ne.s32.totalorder %s55, %s57
      %p61 = scmp.eq.s32.totalorder %s21, 0
      %p62 = por %p60, %p61
      %p63 = scmp.ne.s32.totalorder %s55, %s57
      %p64 = scmp.eq.s32.totalorder %s26, 1
      %p65 = por %p63, %p64
      %p66 = scmp.ne.s32.totalorder %s57, %s58
      %p67 = scmp.eq.s32.totalorder %s26, 0
      %p68 = por %p66, %p67
      %p69 = scmp.ne.s32.totalorder %s57, %s58
      %p70 = scmp.eq.s32.totalorder %s27, 1
      %p71 = por %p69, %p70
      %p73 = scmp.ne.s32.totalorder %s58, %s72
      %p74 = scmp.eq.s32.totalorder %s27, 0
      %p75 = por %p73, %p74
      %s77 = sadd.s32 %s76, 1
      %p80 = scmp.eq.s32.totalorder %s21, 1
      %p81 = scmp.ne.s32.totalorder %s76, %s78
      %p82 = scmp.eq.s32.totalorder %s21, 0
      %p83 = por %p81, %p82
      %p84 = scmp.ne.s32.totalorder %s76, %s78
      %p85 = scmp.eq.s32.totalorder %s26, 1
      %p86 = por %p84, %p85
      %p87 = scmp.ne.s32.totalorder %s78, %s79
      %p88 = scmp.eq.s32.totalorder %s26, 0
      %p89 = por %p87, %p88
      %p90 = scmp.ne.s32.totalorder %s78, %s79
      %p91 = scmp.eq.s32.totalorder %s27, 1
      %p92 = por %p90, %p91
      %p94 = scmp.ne.s32.totalorder %s79, %s93
      %p95 = scmp.eq.s32.totalorder %s27, 0
      %p96 = por %p94, %p95
      %s98 = sadd.s32 %s97, 1
      %p101 = scmp.eq.s32.totalorder %s21, 1
      %p102 = scmp.ne.s32.totalorder %s97, %s99
      %p103 = scmp.eq.s32.totalorder %s21, 0
      %p104 = por %p102, %p103
      %p105 = scmp.ne.s32.totalorder %s97, %s99
      %p106 = scmp.eq.s32.totalorder %s26, 1
      %p107 = por %p105, %p106
      %p108 = scmp.ne.s32.totalorder %s99, %s100
      %p109 = scmp.eq.s32.totalorder %s26, 0
      %p110 = por %p108, %p109
      %p111 = scmp.ne.s32.totalorder %s99, %s100
      %p112 = scmp.eq.s32.totalorder %s27, 1
      %p113 = por %p111, %p112
      %p115 = scmp.ne.s32.totalorder %s100, %s114
      %p116 = scmp.eq.s32.totalorder %s27, 0
      %p117 = por %p115, %p116
      %s119 = sadd.s32 %s118, 1
      %p122 = scmp.eq.s32.totalorder %s21, 1
      %p123 = scmp.ne.s32.totalorder %s118, %s120
      %p124 = scmp.eq.s32.totalorder %s21, 0
      %p125 = por %p123, %p124
      %p126 = scmp.ne.s32.totalorder %s118, %s120
      %p127 = scmp.eq.s32.totalorder %s26, 1
      %p128 = por %p126, %p127
      %p129 = scmp.ne.s32.totalorder %s120, %s121
      %p130 = scmp.eq.s32.totalorder %s26, 0
      %p131 = por %p129, %p130
      %p132 = scmp.ne.s32.totalorder %s120, %s121
      %p133 = scmp.eq.s32.totalorder %s27, 1
      %p134 = por %p132, %p133
      %p136 = scmp.ne.s32.totalorder %s121, %s135
      %p137 = scmp.eq.s32.totalorder %s27, 0
      %p138 = por %p136, %p137
      %s140 = sadd.s32 %s139, 1
      %p143 = scmp.eq.s32.totalorder %s21, 1
      %p144 = scmp.ne.s32.totalorder %s139, %s141
      %p145 = scmp.eq.s32.totalorder %s21, 0
      %p146 = por %p144, %p145
      %p147 = scmp.ne.s32.totalorder %s139, %s141
      %p148 = scmp.eq.s32.totalorder %s26, 1
      %p149 = por %p147, %p148
      %p150 = scmp.ne.s32.totalorder %s141, %s142
      %p151 = scmp.eq.s32.totalorder %s26, 0
      %p152 = por %p150, %p151
      %p153 = scmp.ne.s32.totalorder %s141, %s142
      %p154 = scmp.eq.s32.totalorder %s27, 1
      %p155 = por %p153, %p154
      %p157 = scmp.ne.s32.totalorder %s142, %s156
      %p158 = scmp.eq.s32.totalorder %s27, 0
      %p159 = por %p157, %p158
      %s161 = sadd.s32 %s160, 1
      %p164 = scmp.eq.s32.totalorder %s21, 1
      %p165 = scmp.ne.s32.totalorder %s160, %s162
      %p166 = scmp.eq.s32.totalorder %s21, 0
      %p167 = por %p165, %p166
      %p168 = scmp.ne.s32.totalorder %s160, %s162
      %p169 = scmp.eq.s32.totalorder %s26, 1
      %p170 = por %p168, %p169
      %p171 = scmp.ne.s32.totalorder %s162, %s163
      %p172 = scmp.eq.s32.totalorder %s26, 0
      %p173 = por %p171, %p172
      %p174 = scmp.ne.s32.totalorder %s162, %s163
      %p175 = scmp.eq.s32.totalorder %s27, 1
      %p176 = por %p174, %p175
      %p178 = scmp.ne.s32.totalorder %s163, %s177
      %p179 = scmp.eq.s32.totalorder %s27, 0
      %p180 = por %p178, %p179
      %s181 = ssub.s32 %s21, %s28
      %p182 = scmp.eq.s32.totalorder %s181, 0
      %s184 = sadd.s32 %s183, 1
      %s185 = scalar_select %p182, %s183, %s184
      %p188 = pneg %p182
      %p189 = scmp.eq.s32.totalorder %s21, 1
      %p190 = por %p188, %p189
      %p191 = scmp.ne.s32.totalorder %s183, %s186
      %p192 = scmp.eq.s32.totalorder %s21, 0
      %p193 = por %p191, %p192
      %p194 = scmp.ne.s32.totalorder %s183, %s186
      %p195 = scmp.eq.s32.totalorder %s26, 1
      %p196 = por %p194, %p195
      %p197 = scmp.ne.s32.totalorder %s186, %s187
      %p198 = scmp.eq.s32.totalorder %s26, 0
      %p199 = por %p197, %p198
      %p200 = scmp.ne.s32.totalorder %s186, %s187
      %p201 = scmp.eq.s32.totalorder %s27, 1
      %p202 = por %p200, %p201
      %p204 = scmp.ne.s32.totalorder %s187, %s203
      %p205 = scmp.eq.s32.totalorder %s27, 0
      %p206 = por %p204, %p205
      %p207 = scmp.le.s32.totalorder 1, %s21
      %p208 = scmp.lt.s32.totalorder %s21, 3
      %p209 = pnand %p207, %p208
      %p210 = pneg %p209
      // Predicated region
      $region9: #{tpu_custom_call.1} parent=5 // pred_check
        _
      $region10: #{tpu_custom_call.1} parent=5 // pred_check_branch
        %212 = sbr.rel (%p209) target = $region12
      $region11: #{tpu_custom_call.1} parent=5 // pred_region
        %s213 = ssub.s32 %s21, 1
        // Predicated region
        $region13: #{tpu_custom_call.1} parent=11 // pred_check
          %p214 = pneg %p68
        $region14: #{tpu_custom_call.1} parent=11 // pred_check_branch
          %216 = sbr.rel (%p214) target = $region16
        $region15: #{tpu_custom_call.1} parent=11 // pred_region
          %s218 = ssub.s32 256, 256
          %219 = vsyncadd [#allocation6], %s218
          %s220 = sshll.u32 [#allocation5], 4
          %s221 = int_to_ptr.vmem [resolvable:$true] %s220
          %226 = dma.hbm_to_vmem [thread:$0]  %s1, 256, %s221, [#allocation6], 128, 128, 8
        $region16: #{tpu_custom_call.1} parent=11 // pred_fallthru
          _
        // Predicated region
        $region17: #{tpu_custom_call.1} parent=11 // pred_check
          %p227 = pneg %p89
        $region18: #{tpu_custom_call.1} parent=11 // pred_check_branch
          %229 = sbr.rel (%p227) target = $region20
        $region19: #{tpu_custom_call.1} parent=11 // pred_region
          _
        $region20: #{tpu_custom_call.1} parent=11 // pred_fallthru
          _
        // Predicated region
        $region21: #{tpu_custom_call.1} parent=11 // pred_check
          %p230 = pneg %p110
        $region22: #{tpu_custom_call.1} parent=11 // pred_check_branch
          %232 = sbr.rel (%p230) target = $region24
        $region23: #{tpu_custom_call.1} parent=11 // pred_region
          %s234 = ssub.s32 2048, 2048
          %235 = vsyncadd [#allocation6], %s234
          %s236 = sshll.u32 [#allocation7], 4
          %s237 = int_to_ptr.vmem [resolvable:$true] %s236
          %242 = dma.hbm_to_vmem [thread:$0]  %s3, 2048, %s237, [#allocation6], 128, 128, 8
        $region24: #{tpu_custom_call.1} parent=11 // pred_fallthru
          _
        // Predicated region
        $region25: #{tpu_custom_call.1} parent=11 // pred_check
          %p243 = pneg %p131
        $region26: #{tpu_custom_call.1} parent=11 // pred_check_branch
          %245 = sbr.rel (%p243) target = $region28
        $region27: #{tpu_custom_call.1} parent=11 // pred_region
          _
        $region28: #{tpu_custom_call.1} parent=11 // pred_fallthru
          _
        // Predicated region
        $region29: #{tpu_custom_call.1} parent=11 // pred_check
          %p246 = pneg %p152
        $region30: #{tpu_custom_call.1} parent=11 // pred_check_branch
          %248 = sbr.rel (%p246) target = $region32
        $region31: #{tpu_custom_call.1} parent=11 // pred_region
          %s250 = ssub.s32 2048, 2048
          %251 = vsyncadd [#allocation9], %s250
          %s252 = sshll.u32 [#allocation8], 4
          %s253 = int_to_ptr.vmem [resolvable:$true] %s252
          %258 = dma.hbm_to_vmem [thread:$0]  %s5, 2048, %s253, [#allocation9], 128, 128, 8
        $region32: #{tpu_custom_call.1} parent=11 // pred_fallthru
          _
        // Predicated region
        $region33: #{tpu_custom_call.1} parent=11 // pred_check
          %p259 = pneg %p173
        $region34: #{tpu_custom_call.1} parent=11 // pred_check_branch
          %261 = sbr.rel (%p259) target = $region36
        $region35: #{tpu_custom_call.1} parent=11 // pred_region
          _
        $region36: #{tpu_custom_call.1} parent=11 // pred_fallthru
          _
      $region12: #{tpu_custom_call.1} parent=5 // pred_fallthru
        _
      %p262 = scmp.lt.s32.totalorder %s21, 2
      // Predicated region
      $region37: #{tpu_custom_call.1} parent=5 // pred_check
        %p263 = pneg %p262
      $region38: #{tpu_custom_call.1} parent=5 // pred_check_branch
        %265 = sbr.rel (%p263) target = $region40
      $region39: #{tpu_custom_call.1} parent=5 // pred_region
        // Predicated region
        $region41: #{tpu_custom_call.1} parent=39 // pred_check
          %p266 = pneg %p41
        $region42: #{tpu_custom_call.1} parent=39 // pred_check_branch
          %268 = sbr.rel (%p266) target = $region44
        $region43: #{tpu_custom_call.1} parent=39 // pred_region
          %s269 = sand.u32 %s31, 1
          %s270 = scalar_lea.sflag [#allocation3], %s269
          %s271 = sand.u32 %s31, 1
          %s272 = smul.addr %s271, 32
          %s273 = scalar_lea.vmem [#allocation2], %s272
          %s274 = smul.u32 8, %s21
          %s276 = ssub.s32 512, 512
          %277 = vsyncadd %s270, %s276
          %s278 = smul.addr %s274, 64
          %s279 = scalar_lea.hbm %s0, %s278
          %s280 = sshll.u32 %s273, 4
          %s281 = int_to_ptr.vmem [resolvable:$true] %s280
          %286 = dma.hbm_to_vmem [thread:$0]  %s279, 512, %s281, %s270, 64, 64, 4
        $region44: #{tpu_custom_call.1} parent=39 // pred_fallthru
          _
      $region40: #{tpu_custom_call.1} parent=5 // pred_fallthru
        _
      %p287 = scmp.le.s32.totalorder 1, %s21
      %p288 = scmp.lt.s32.totalorder %s21, 3
      %p289 = pnand %p287, %p288
      %p290 = pneg %p289
      // Predicated region
      $region45: #{tpu_custom_call.1} parent=5 // pred_check
        _
      $region46: #{tpu_custom_call.1} parent=5 // pred_check_branch
        %292 = sbr.rel (%p289) target = $region48
      $region47: #{tpu_custom_call.1} parent=5 // pred_region
        %s293 = ssub.s32 %s21, 1
        %s294 = sand.u32 %s34, 1
        %s295 = scalar_lea.sflag [#allocation3], %s294
        %s296 = sand.u32 %s34, 1
        %s297 = smul.addr %s296, 32
        %s298 = scalar_lea.vmem [#allocation2], %s297
        // Predicated region
        $region49: #{tpu_custom_call.1} parent=47 // pred_check
          %p299 = pneg %p47
        $region50: #{tpu_custom_call.1} parent=47 // pred_check_branch
          %301 = sbr.rel (%p299) target = $region52
        $region51: #{tpu_custom_call.1} parent=47 // pred_region
          %302 = dma.done %s295, 512
        $region52: #{tpu_custom_call.1} parent=47 // pred_fallthru
          _
        // Predicated region
        $region53: #{tpu_custom_call.1} parent=47 // pred_check
          %p303 = pneg %p68
        $region54: #{tpu_custom_call.1} parent=47 // pred_check_branch
          %305 = sbr.rel (%p303) target = $region56
        $region55: #{tpu_custom_call.1} parent=47 // pred_region
          %306 = dma.done [#allocation6], 256
        $region56: #{tpu_custom_call.1} parent=47 // pred_fallthru
          _
        // Predicated region
        $region57: #{tpu_custom_call.1} parent=47 // pred_check
          %p307 = pneg %p110
        $region58: #{tpu_custom_call.1} parent=47 // pred_check_branch
          %309 = sbr.rel (%p307) target = $region60
        $region59: #{tpu_custom_call.1} parent=47 // pred_region
          %310 = dma.done [#allocation6], 2048
        $region60: #{tpu_custom_call.1} parent=47 // pred_fallthru
          _
        // Predicated region
        $region61: #{tpu_custom_call.1} parent=47 // pred_check
          %p311 = pneg %p152
        $region62: #{tpu_custom_call.1} parent=47 // pred_check_branch
          %313 = sbr.rel (%p311) target = $region64
        $region63: #{tpu_custom_call.1} parent=47 // pred_region
          %314 = dma.done [#allocation9], 2048
        $region64: #{tpu_custom_call.1} parent=47 // pred_fallthru
          _
        %s315 = sand.u32 %s34, 1
        %s316 = scalar_lea.sflag [#allocation3], %s315
        %s317 = sand.u32 %s34, 1
        %s318 = smul.addr %s317, 32
        %s319 = scalar_lea.vmem [#allocation2], %s318
        %p320 = pneg %p47
        %p321 = pneg %p44
        %p322 = pneg %p68
        %p323 = pneg %p65
        %p324 = pneg %p89
        %p325 = pneg %p86
        %p326 = pneg %p110
        %p327 = pneg %p107
        %p328 = pneg %p131
        %p329 = pneg %p128
        %p330 = pneg %p152
        %p331 = pneg %p149
        %p332 = pneg %p173
        %p333 = pneg %p170
        %p334 = pneg %p199
        %p335 = pneg %p196
        %s336 = sand.u32 %s186, 1
        %s337 = scalar_lea.sflag [#allocation4], %s336
        %s338 = sand.u32 %s186, 1
        %s339 = smul.addr %s338, 8
        %s340 = scalar_lea.vmem [#allocation10], %s339
        %s341 = smul.u32 8, %s26
        %v342 = vld [vmem:[%s298] sm:$0xf]
        %v343 = vld [vmem:[%s298 + $0x4] sm:$0xf]
        %v344 = vld [vmem:[%s298 + $0x8] sm:$0xf]
        %v345 = vld [vmem:[%s298 + $0xc] sm:$0xf]
        %v346 = vld [vmem:[%s298 + $0x10] sm:$0xf]
        %v347 = vld [vmem:[%s298 + $0x14] sm:$0xf]
        %v348 = vld [vmem:[%s298 + $0x18] sm:$0xf]
        %v349 = vld [vmem:[%s298 + $0x1c] sm:$0xf]
        %vm350 = vcmask 125952
        %v351 = vsel %vm350, %v342, 0.0
        %v352 = vrot.slane %v351, 4
        %v353 = vadd.f32 %v351, %v352
        %v354 = vrot.slane %v353, 2
        %v355 = vadd.f32 %v353, %v354
        %v356 = vrot.slane %v355, 1
        %v357 = vadd.f32 %v355, %v356
        %v358 = vsel %vm350, %v343, 0.0
        %v359 = vrot.slane %v358, 4
        %v360 = vadd.f32 %v358, %v359
        %v361 = vrot.slane %v360, 2
        %v362 = vadd.f32 %v360, %v361
        %v363 = vrot.slane %v362, 1
        %v364 = vadd.f32 %v362, %v363
        %v365 = vsel %vm350, %v344, 0.0
        %v366 = vrot.slane %v365, 4
        %v367 = vadd.f32 %v365, %v366
        %v368 = vrot.slane %v367, 2
        %v369 = vadd.f32 %v367, %v368
        %v370 = vrot.slane %v369, 1
        %v371 = vadd.f32 %v369, %v370
        %v372 = vsel %vm350, %v345, 0.0
        %v373 = vrot.slane %v372, 4
        %v374 = vadd.f32 %v372, %v373
        %v375 = vrot.slane %v374, 2
        %v376 = vadd.f32 %v374, %v375
        %v377 = vrot.slane %v376, 1
        %v378 = vadd.f32 %v376, %v377
        %v379 = vsel %vm350, %v346, 0.0
        %v380 = vrot.slane %v379, 4
        %v381 = vadd.f32 %v379, %v380
        %v382 = vrot.slane %v381, 2
        %v383 = vadd.f32 %v381, %v382
        %v384 = vrot.slane %v383, 1
        %v385 = vadd.f32 %v383, %v384
        %v386 = vsel %vm350, %v347, 0.0
        %v387 = vrot.slane %v386, 4
        %v388 = vadd.f32 %v386, %v387
        %v389 = vrot.slane %v388, 2
        %v390 = vadd.f32 %v388, %v389
        %v391 = vrot.slane %v390, 1
        %v392 = vadd.f32 %v390, %v391
        %v393 = vsel %vm350, %v348, 0.0
        %v394 = vrot.slane %v393, 4
        %v395 = vadd.f32 %v393, %v394
        %v396 = vrot.slane %v395, 2
        %v397 = vadd.f32 %v395, %v396
        %v398 = vrot.slane %v397, 1
        %v399 = vadd.f32 %v397, %v398
        %v400 = vsel %vm350, %v349, 0.0
        %v401 = vrot.slane %v400, 4
        %v402 = vadd.f32 %v400, %v401
        %v403 = vrot.slane %v402, 2
        %v404 = vadd.f32 %v402, %v403
        %v405 = vrot.slane %v404, 1
        %v406 = vadd.f32 %v404, %v405
        %v407 = vmul.f32 %v357, 0.25
        %v408 = vmul.f32 %v364, 0.25
        %v409 = vmul.f32 %v371, 0.25
        %v410 = vmul.f32 %v378, 0.25
        %v411 = vmul.f32 %v385, 0.25
        %v412 = vmul.f32 %v392, 0.25
        %v413 = vmul.f32 %v399, 0.25
        %v414 = vmul.f32 %v406, 0.25
        %v415 = vld [vmem:[#allocation5] sm:$0xff]
        %v416 = vld [vmem:[#allocation5 + $0x8] sm:$0xff]
        %v417 = vld [vmem:[%s2] sm:$0x1]
        %v419 = vlaneseq
        %v420 = vshrl.u32 %v419, 7
        %v421 = vsub.s32 0, %v420
        %v422 = vrot.slane %v417, %v421
        %vm432 = vcmask 1041409
        %v433 = vsel %vm432, %v408, %v407
        %vm434 = vcmask 1042434
        %v435 = vsel %vm434, %v409, %v433
        %vm436 = vcmask 1043459
        %v437 = vsel %vm436, %v410, %v435
        %vm438 = vcmask 1044484
        %v439 = vsel %vm438, %v411, %v437
        %vm440 = vcmask 1045509
        %v441 = vsel %vm440, %v412, %v439
        %vm442 = vcmask 1046534
        %v443 = vsel %vm442, %v413, %v441
        %vm444 = vcmask 1047559
        %v445 = vsel %vm444, %v414, %v443
        %vm446 = vcmask 130048
        %v447 = vsel %vm446, %v445, 0
        %449 = vmatprep.subr.mxu0 0.0
        %450 = vmatpush1.msra.mxu0 0.0
        %451 = vmatprep.subr.mxu0 0.0
        %452 = vmatpush1.msra.mxu0 0.0
        %453 = vmatprep.subr.mxu0 0.0
        %454 = vmatpush1.msra.mxu0 0.0
        %455 = vmatprep.subr.mxu0 0.0
        %456 = vmatpush1.msra.mxu0 0.0
        %457 = vmatprep.subr.mxu0 0.0
        %458 = vmatpush1.msra.mxu0 0.0
        %459 = vmatprep.subr.mxu0 0.0
        %460 = vmatpush1.msra.mxu0 0.0
        %461 = vmatprep.subr.mxu0 0.0
        %462 = vmatpush1.msra.mxu0 0.0
        %463 = vmatprep.subr.mxu0 0.0
        %464 = vmatpush1.msra.mxu0 0.0
        %465 = vmatprep.subr.mxu0 0.0
        %466 = vmatpush1.msra.mxu0 0.0
        %467 = vmatprep.subr.mxu0 0.0
        %468 = vmatpush1.msra.mxu0 0.0
        %469 = vmatprep.subr.mxu0 0.0
        %470 = vmatpush1.msra.mxu0 0.0
        %471 = vmatprep.subr.mxu0 0.0
        %472 = vmatpush1.msra.mxu0 0.0
        %473 = vmatprep.subr.mxu0 0.0
        %474 = vmatpush1.msra.mxu0 0.0
        %475 = vmatprep.subr.mxu0 0.0
        %476 = vmatpush1.msra.mxu0 0.0
        %477 = vmatprep.subr.mxu0 0.0
        %478 = vmatpush1.msra.mxu0 %v416
        %479 = vmatprep.subr.mxu0 0.0
        %480 = vmatpush1.msra.mxu0 %v415
        %481 = vmatprep.subr.mxu0 0.0
        %482 = vmatpush2.msra.mxu0 0.0
        %483 = vmatprep.subr.mxu0 0.0
        %484 = vmatpush2.msra.mxu0 0.0
        %485 = vmatprep.subr.mxu0 0.0
        %486 = vmatpush2.msra.mxu0 0.0
        %487 = vmatprep.subr.mxu0 0.0
        %488 = vmatpush2.msra.mxu0 0.0
        %489 = vmatprep.subr.mxu0 0.0
        %490 = vmatpush2.msra.mxu0 0.0
        %491 = vmatprep.subr.mxu0 0.0
        %492 = vmatpush2.msra.mxu0 0.0
        %493 = vmatprep.subr.mxu0 0.0
        %494 = vmatpush2.msra.mxu0 0.0
        %495 = vmatprep.subr.mxu0 0.0
        %496 = vmatpush2.msra.mxu0 0.0
        %497 = vmatprep.subr.mxu0 0.0
        %498 = vmatpush2.msra.mxu0 0.0
        %499 = vmatprep.subr.mxu0 0.0
        %500 = vmatpush2.msra.mxu0 0.0
        %501 = vmatprep.subr.mxu0 0.0
        %502 = vmatpush2.msra.mxu0 0.0
        %503 = vmatprep.subr.mxu0 0.0
        %504 = vmatpush2.msra.mxu0 0.0
        %505 = vmatprep.subr.mxu0 0.0
        %506 = vmatpush2.msra.mxu0 0.0
        %507 = vmatprep.subr.mxu0 0.0
        %508 = vmatpush2.msra.mxu0 0.0
        %509 = vmatprep.subr.mxu0 0.0
        %510 = vmatpush2.msra.mxu0 0.0
        %511 = vmatprep.subr.mxu0 0.0
        %512 = vmatpush2.msra.mxu0 0.0
        %513 = vmatprep.mubr.f32.mxu0 0.0
        %514 = vmatmul.mubr.f32.gmra.mxu0 %v447
        %v515 = vpop.f32.mrf.mxu0
        %v516 = vadd.f32 %v422, %v515
        %v517 = vpop.f32.mrf.mxu0
        %518 = vdwg.mxu0
        %v519 = vmax.f32 %v516, 0.0
        %v520 = vld [vmem:[#allocation7] sm:$0xff]
        %v521 = vld [vmem:[#allocation7 + $0x8] sm:$0xff]
        %v522 = vld [vmem:[#allocation7 + $0x10] sm:$0xff]
        %v523 = vld [vmem:[#allocation7 + $0x18] sm:$0xff]
        %v524 = vld [vmem:[#allocation7 + $0x20] sm:$0xff]
        %v525 = vld [vmem:[#allocation7 + $0x28] sm:$0xff]
        %v526 = vld [vmem:[#allocation7 + $0x30] sm:$0xff]
        %v527 = vld [vmem:[#allocation7 + $0x38] sm:$0xff]
        %v528 = vld [vmem:[#allocation7 + $0x40] sm:$0xff]
        %v529 = vld [vmem:[#allocation7 + $0x48] sm:$0xff]
        %v530 = vld [vmem:[#allocation7 + $0x50] sm:$0xff]
        %v531 = vld [vmem:[#allocation7 + $0x58] sm:$0xff]
        %v532 = vld [vmem:[#allocation7 + $0x60] sm:$0xff]
        %v533 = vld [vmem:[#allocation7 + $0x68] sm:$0xff]
        %v534 = vld [vmem:[#allocation7 + $0x70] sm:$0xff]
        %v535 = vld [vmem:[#allocation7 + $0x78] sm:$0xff]
        %v536 = vld [vmem:[%s4] sm:$0x1]
        %v538 = vlaneseq
        %v539 = vshrl.u32 %v538, 7
        %v540 = vsub.s32 0, %v539
        %v541 = vrot.slane %v536, %v540
        %543 = vmatprep.subr.mxu0 0.0
        %544 = vmatpush1.msra.mxu0 %v535
        %545 = vmatprep.subr.mxu0 0.0
        %546 = vmatpush1.msra.mxu0 %v534
        %547 = vmatprep.subr.mxu0 0.0
        %548 = vmatpush1.msra.mxu0 %v533
        %549 = vmatprep.subr.mxu0 0.0
        %550 = vmatpush1.msra.mxu0 %v532
        %551 = vmatprep.subr.mxu0 0.0
        %552 = vmatpush1.msra.mxu0 %v531
        %553 = vmatprep.subr.mxu0 0.0
        %554 = vmatpush1.msra.mxu0 %v530
        %555 = vmatprep.subr.mxu0 0.0
        %556 = vmatpush1.msra.mxu0 %v529
        %557 = vmatprep.subr.mxu0 0.0
        %558 = vmatpush1.msra.mxu0 %v528
        %559 = vmatprep.subr.mxu0 0.0
        %560 = vmatpush1.msra.mxu0 %v527
        %561 = vmatprep.subr.mxu0 0.0
        %562 = vmatpush1.msra.mxu0 %v526
        %563 = vmatprep.subr.mxu0 0.0
        %564 = vmatpush1.msra.mxu0 %v525
        %565 = vmatprep.subr.mxu0 0.0
        %566 = vmatpush1.msra.mxu0 %v524
        %567 = vmatprep.subr.mxu0 0.0
        %568 = vmatpush1.msra.mxu0 %v523
        %569 = vmatprep.subr.mxu0 0.0
        %570 = vmatpush1.msra.mxu0 %v522
        %571 = vmatprep.subr.mxu0 0.0
        %572 = vmatpush1.msra.mxu0 %v521
        %573 = vmatprep.subr.mxu0 0.0
        %574 = vmatpush1.msra.mxu0 %v520
        %575 = vmatprep.subr.mxu0 0.0
        %576 = vmatpush2.msra.mxu0 0.0
        %577 = vmatprep.subr.mxu0 0.0
        %578 = vmatpush2.msra.mxu0 0.0
        %579 = vmatprep.subr.mxu0 0.0
        %580 = vmatpush2.msra.mxu0 0.0
        %581 = vmatprep.subr.mxu0 0.0
        %582 = vmatpush2.msra.mxu0 0.0
        %583 = vmatprep.subr.mxu0 0.0
        %584 = vmatpush2.msra.mxu0 0.0
        %585 = vmatprep.subr.mxu0 0.0
        %586 = vmatpush2.msra.mxu0 0.0
        %587 = vmatprep.subr.mxu0 0.0
        %588 = vmatpush2.msra.mxu0 0.0
        %589 = vmatprep.subr.mxu0 0.0
        %590 = vmatpush2.msra.mxu0 0.0
        %591 = vmatprep.subr.mxu0 0.0
        %592 = vmatpush2.msra.mxu0 0.0
        %593 = vmatprep.subr.mxu0 0.0
        %594 = vmatpush2.msra.mxu0 0.0
        %595 = vmatprep.subr.mxu0 0.0
        %596 = vmatpush2.msra.mxu0 0.0
        %597 = vmatprep.subr.mxu0 0.0
        %598 = vmatpush2.msra.mxu0 0.0
        %599 = vmatprep.subr.mxu0 0.0
        %600 = vmatpush2.msra.mxu0 0.0
        %601 = vmatprep.subr.mxu0 0.0
        %602 = vmatpush2.msra.mxu0 0.0
        %603 = vmatprep.subr.mxu0 0.0
        %604 = vmatpush2.msra.mxu0 0.0
        %605 = vmatprep.subr.mxu0 0.0
        %606 = vmatpush2.msra.mxu0 0.0
        %607 = vmatprep.mubr.f32.mxu0 0.0
        %608 = vmatmul.mubr.f32.gmra.mxu0 %v519
        %v609 = vpop.f32.mrf.mxu0
        %v610 = vadd.f32 %v541, %v609
        %v611 = vpop.f32.mrf.mxu0
        %612 = vdwg.mxu0
        %v613 = vmax.f32 %v610, 0.0
        %v614 = vld [vmem:[#allocation8] sm:$0xff]
        %v615 = vld [vmem:[#allocation8 + $0x8] sm:$0xff]
        %v616 = vld [vmem:[#allocation8 + $0x10] sm:$0xff]
        %v617 = vld [vmem:[#allocation8 + $0x18] sm:$0xff]
        %v618 = vld [vmem:[#allocation8 + $0x20] sm:$0xff]
        %v619 = vld [vmem:[#allocation8 + $0x28] sm:$0xff]
        %v620 = vld [vmem:[#allocation8 + $0x30] sm:$0xff]
        %v621 = vld [vmem:[#allocation8 + $0x38] sm:$0xff]
        %v622 = vld [vmem:[#allocation8 + $0x40] sm:$0xff]
        %v623 = vld [vmem:[#allocation8 + $0x48] sm:$0xff]
        %v624 = vld [vmem:[#allocation8 + $0x50] sm:$0xff]
        %v625 = vld [vmem:[#allocation8 + $0x58] sm:$0xff]
        %v626 = vld [vmem:[#allocation8 + $0x60] sm:$0xff]
        %v627 = vld [vmem:[#allocation8 + $0x68] sm:$0xff]
        %v628 = vld [vmem:[#allocation8 + $0x70] sm:$0xff]
        %v629 = vld [vmem:[#allocation8 + $0x78] sm:$0xff]
        %v630 = vld [vmem:[%s6] sm:$0x1]
        %v632 = vlaneseq
        %v633 = vshrl.u32 %v632, 7
        %v634 = vsub.s32 0, %v633
        %v635 = vrot.slane %v630, %v634
        %637 = vmatprep.subr.mxu0 0.0
        %638 = vmatpush1.msra.mxu0 %v629
        %639 = vmatprep.subr.mxu0 0.0
        %640 = vmatpush1.msra.mxu0 %v628
        %641 = vmatprep.subr.mxu0 0.0
        %642 = vmatpush1.msra.mxu0 %v627
        %643 = vmatprep.subr.mxu0 0.0
        %644 = vmatpush1.msra.mxu0 %v626
        %645 = vmatprep.subr.mxu0 0.0
        %646 = vmatpush1.msra.mxu0 %v625
        %647 = vmatprep.subr.mxu0 0.0
        %648 = vmatpush1.msra.mxu0 %v624
        %649 = vmatprep.subr.mxu0 0.0
        %650 = vmatpush1.msra.mxu0 %v623
        %651 = vmatprep.subr.mxu0 0.0
        %652 = vmatpush1.msra.mxu0 %v622
        %653 = vmatprep.subr.mxu0 0.0
        %654 = vmatpush1.msra.mxu0 %v621
        %655 = vmatprep.subr.mxu0 0.0
        %656 = vmatpush1.msra.mxu0 %v620
        %657 = vmatprep.subr.mxu0 0.0
        %658 = vmatpush1.msra.mxu0 %v619
        %659 = vmatprep.subr.mxu0 0.0
        %660 = vmatpush1.msra.mxu0 %v618
        %661 = vmatprep.subr.mxu0 0.0
        %662 = vmatpush1.msra.mxu0 %v617
        %663 = vmatprep.subr.mxu0 0.0
        %664 = vmatpush1.msra.mxu0 %v616
        %665 = vmatprep.subr.mxu0 0.0
        %666 = vmatpush1.msra.mxu0 %v615
        %667 = vmatprep.subr.mxu0 0.0
        %668 = vmatpush1.msra.mxu0 %v614
        %669 = vmatprep.subr.mxu0 0.0
        %670 = vmatpush2.msra.mxu0 0.0
        %671 = vmatprep.subr.mxu0 0.0
        %672 = vmatpush2.msra.mxu0 0.0
        %673 = vmatprep.subr.mxu0 0.0
        %674 = vmatpush2.msra.mxu0 0.0
        %675 = vmatprep.subr.mxu0 0.0
        %676 = vmatpush2.msra.mxu0 0.0
        %677 = vmatprep.subr.mxu0 0.0
        %678 = vmatpush2.msra.mxu0 0.0
        %679 = vmatprep.subr.mxu0 0.0
        %680 = vmatpush2.msra.mxu0 0.0
        %681 = vmatprep.subr.mxu0 0.0
        %682 = vmatpush2.msra.mxu0 0.0
        %683 = vmatprep.subr.mxu0 0.0
        %684 = vmatpush2.msra.mxu0 0.0
        %685 = vmatprep.subr.mxu0 0.0
        %686 = vmatpush2.msra.mxu0 0.0
        %687 = vmatprep.subr.mxu0 0.0
        %688 = vmatpush2.msra.mxu0 0.0
        %689 = vmatprep.subr.mxu0 0.0
        %690 = vmatpush2.msra.mxu0 0.0
        %691 = vmatprep.subr.mxu0 0.0
        %692 = vmatpush2.msra.mxu0 0.0
        %693 = vmatprep.subr.mxu0 0.0
        %694 = vmatpush2.msra.mxu0 0.0
        %695 = vmatprep.subr.mxu0 0.0
        %696 = vmatpush2.msra.mxu0 0.0
        %697 = vmatprep.subr.mxu0 0.0
        %698 = vmatpush2.msra.mxu0 0.0
        %699 = vmatprep.subr.mxu0 0.0
        %700 = vmatpush2.msra.mxu0 0.0
        %701 = vmatprep.mubr.f32.mxu0 0.0
        %702 = vmatmul.mubr.f32.gmra.mxu0 %v613
        %v703 = vpop.f32.mrf.mxu0
        %v704 = vadd.f32 %v635, %v703
        %v705 = vpop.f32.mrf.mxu0
        %706 = vdwg.mxu0
        %v707 = vmax.f32 %v704, 0.0
        %708 = vst [vmem:[%s340] sm:$0xff] %v707
        %s709 = sand.u32 %s186, 1
        %s710 = scalar_lea.sflag [#allocation4], %s709
        %s711 = sand.u32 %s186, 1
        %s712 = smul.addr %s711, 8
        %s713 = scalar_lea.vmem [#allocation10], %s712
        // Predicated region
        $region65: #{tpu_custom_call.1} parent=47 // pred_check
          %p714 = pneg %p196
        $region66: #{tpu_custom_call.1} parent=47 // pred_check_branch
          %716 = sbr.rel (%p714) target = $region68
        $region67: #{tpu_custom_call.1} parent=47 // pred_region
          %s718 = ssub.s32 128, 128
          %719 = vsyncadd %s710, %s718
          %s720 = smul.addr %s26, 128
          %s721 = scalar_lea.hbm %s7, %s720
          %s723 = sshll.u32 %s713, 4
          %s724 = int_to_ptr.vmem [resolvable:$true] %s723
          %726 = dma.vmem_to_hbm [thread:$0]  %s724, 128, %s721, %s710
        $region68: #{tpu_custom_call.1} parent=47 // pred_fallthru
          _
      $region48: #{tpu_custom_call.1} parent=5 // pred_fallthru
        _
      %p727 = scmp.le.s32.totalorder 2, %s21
      // Predicated region
      $region69: #{tpu_custom_call.1} parent=5 // pred_check
        %p728 = pneg %p727
      $region70: #{tpu_custom_call.1} parent=5 // pred_check_branch
        %730 = sbr.rel (%p728) target = $region72
      $region71: #{tpu_custom_call.1} parent=5 // pred_region
        %s731 = ssub.s32 %s21, 2
        // Predicated region
        $region73: #{tpu_custom_call.1} parent=71 // pred_check
          %p732 = pneg %p202
        $region74: #{tpu_custom_call.1} parent=71 // pred_check_branch
          %734 = sbr.rel (%p732) target = $region76
        $region75: #{tpu_custom_call.1} parent=71 // pred_region
          %s735 = sand.u32 %s187, 1
          %s736 = scalar_lea.sflag [#allocation4], %s735
          %s737 = sand.u32 %s187, 1
          %s738 = smul.addr %s737, 8
          %s739 = scalar_lea.vmem [#allocation10], %s738
          %740 = dma.done %s736, 128
        $region76: #{tpu_custom_call.1} parent=71 // pred_fallthru
          _
      $region72: #{tpu_custom_call.1} parent=5 // pred_fallthru
        _
    $region6: #{tpu_custom_call.1} parent=1 // loop_footer
      %s25 = sadd.s32 1, %s21
    $region7: #{tpu_custom_call.1} parent=1 // loop_footer_branch
      %20 = sbr.rel target = $region3
    $region8: #{tpu_custom_call.1} parent=1 // loop_exit
      _
    %741 = vsyncpa [#allocation3], 1
    %s742 = scalar_lea.sflag [#allocation3], 1
    %743 = vsyncpa %s742, 1
    %744 = vsyncpa [#allocation6], 1
    %745 = vsyncpa [#allocation9], 1
    %746 = vsyncpa [#allocation4], 1
    %s747 = scalar_lea.sflag [#allocation4], 1
    %748 = vsyncpa %s747, 1

</llo_original>
